<compile_context>
chip_gen: v7x
topology: tpu7x:2x2x1
jax: 0.10.0
libtpu: 0.0.40
codegen_flags: <defaults>
</compile_context>

<pallas_src>
import functools

import jax
import jax.numpy as jnp
from jax import lax
from jax.experimental import pallas as pl
from jax.experimental.pallas import tpu as pltpu


def _cdiv(a, b):
    return -(-a // b)


def _round_up(x, m):
    return _cdiv(x, m) * m


def _row_multiple(dtype):
    # sublane packing: f32 -> 8 rows / vreg, bf16 -> 16, int8/fp8 -> 32
    return {4: 8, 2: 16, 1: 32}.get(jnp.dtype(dtype).itemsize, 8)


def _supports_pipeline_mode():
    if not hasattr(pl, "Buffered"):
        return False
    try:
        pl.BlockSpec((8, 128), lambda i: (i, 0), pipeline_mode=pl.Buffered(1))
        return True
    except TypeError:
        return False


_HAS_BUFFERED = _supports_pipeline_mode()


@functools.lru_cache(maxsize=1)
def _vmem_capacity_bytes():
    try:
        return int(pltpu.get_tpu_info().vmem_capacity_bytes)
    except Exception:          # capability probe only; conservative v7x default
        return 64 * 2 ** 20


def _spec(shape, index_map, *, buffers=None):
    if buffers is not None and _HAS_BUFFERED:
        return pl.BlockSpec(shape, index_map, pipeline_mode=pl.Buffered(buffers))
    return pl.BlockSpec(shape, index_map)


def _ffn_kernel(x_ref, w1_ref, b1_ref, w2_ref, b2_ref, o_ref, acc_ref, *,
                approximate_gelu):
    # Grid: (row tiles [parallel], hidden tiles [arbitrary / reduction]).
    # x_ref  : (TM, dim)   token tile (native dtype; block index invariant over k)
    # w1_ref : (TH, dim)   slab of first Linear weight, native (out, in) layout
    # b1_ref : (1, TH)
    # w2_ref : (dim, TH)   slab of second Linear weight, native (out, in) layout
    # b2_ref : (1, dim)    grid-invariant
    # o_ref  : (TM, dim)   written only on the last hidden step
    # acc_ref: (TM, dim)   f32 accumulator scratch
    k = pl.program_id(1)

    @pl.when(k == 0)
    def _init():
        acc_ref[...] = jnp.zeros_like(acc_ref)

    # Contract the last axis of both operands -> A @ B^T without any HBM transpose of
    # the torch-layout weights.  (Verified to lower without per-step vxpose on the
    # previous version; re-check with pl.lower_as_mlir if weights/layout change.)
    contract_last = (((1,), (1,)), ((), ()))

    x = x_ref[...]
    if x.dtype != w1_ref.dtype:
        x = x.astype(w1_ref.dtype)          # matmul operands in one (native) dtype

    # First linear slab (MXU, f32 accumulation):  x @ W1[k]^T + b1[k]
    h = lax.dot_general(x, w1_ref[...], contract_last,
                        preferred_element_type=jnp.float32)
    h = h + b1_ref[...].astype(jnp.float32)

    if approximate_gelu:
        # tanh GELU -> EUP slot (idle under an MXU-bound kernel)
        h = 0.5 * h * (1.0 + jnp.tanh(0.7978845608028654 * (h + 0.044715 * h * h * h)))
    else:
        # exact erf GELU -- matches torch.nn.GELU() default (VPU polynomial)
        h = 0.5 * h * (1.0 + lax.erf(h * 0.7071067811865476))

    # Dropout(p=0.0) is the identity in both train and eval -> no-op.
    # TODO(synk): nonzero-p training dropout would need pltpu.prng_seed/prng_random_bits.

    # Second linear slab, accumulated over hidden tiles:  acc += h @ W2[:, k]^T
    h = h.astype(w2_ref.dtype)
    acc_ref[...] += lax.dot_general(h, w2_ref[...], contract_last,
                                    preferred_element_type=jnp.float32)

    @pl.when(k == pl.num_programs(1) - 1)
    def _finalize():
        o_ref[...] = (acc_ref[...] + b2_ref[...].astype(jnp.float32)).astype(o_ref.dtype)


def _choose_tiles(m, dim, hidden, x_dtype, w_dtype, o_dtype, tm_req, th_req):
    """Pick (row tile, hidden tile, est. VMEM bytes, budget, capacity)."""
    x_item = jnp.dtype(x_dtype).itemsize
    w_item = jnp.dtype(w_dtype).itemsize
    o_item = jnp.dtype(o_dtype).itemsize

    cap = _vmem_capacity_bytes()
    budget = int(0.6 * cap)

    row_mult = max(_row_multiple(x_dtype), _row_multiple(o_dtype))

    if tm_req is None:
        # 128-MiB-VMEM chips (v5e/v6e): bigger row tiles amortize per-step overhead.
        tm_req = 512 if cap >= 100 * 2 ** 20 else 256

    tm = min(_round_up(tm_req, row_mult), _round_up(m, row_mult))
    # Megacore-friendliness (v7x has 2 TCs): prefer >= 2 row tiles when possible.
    if _cdiv(m, tm) < 2 and m > row_mult:
        tm = _round_up(_cdiv(m, 2), row_mult)

    fixed = (2 * tm * dim * x_item          # double-buffered x tiles
             + 2 * tm * dim * o_item        # double-buffered out tiles
             + tm * dim * 4                 # f32 accumulator scratch
             + 8 * dim * 4)                 # b2

    def usage(th_):
        resident = th_ >= hidden
        nb = 1 if (resident and _HAS_BUFFERED) else 2
        return (fixed
                + nb * 2 * th_ * dim * w_item   # W1 + W2 slabs
                + tm * th_ * 4                  # f32 intermediate h
                + nb * 8 * th_ * 4)             # b1

    if th_req is not None:
        th = th_req
        if th < hidden:
            assert th % 128 == 0, "hidden_tile must be a multiple of 128"
    elif usage(hidden) <= budget:
        th = hidden
    else:
        per_th = 2 * 2 * dim * w_item + tm * 4 + 2 * 8 * 4
        th_cap = max(128, ((budget - fixed) // per_th) // 128 * 128)
        h128 = _round_up(hidden, 128)
        th_cap = min(th_cap, h128)
        th = 128
        cand = th_cap
        while cand >= 128:                  # prefer a tile that divides padded hidden
            if h128 % cand == 0:
                th = cand
                break
            cand -= 128

    return tm, th, usage(th), budget, cap


@functools.partial(
    jax.jit,
    static_argnames=("tm", "approximate_gelu", "cast_to_bf16", "hidden_tile"))
def _feed_forward_impl(x, w1, b1, w2, b2, *, tm, approximate_gelu, cast_to_bf16,
                       hidden_tile):
    *lead, dim = x.shape
    hidden = w1.shape[0]
    m = 1
    for d in lead:
        m *= d
    m = max(m, 1)

    # Opt-in: bf16 matmul operands (native MXU rate), f32 accumulation preserved.
    if cast_to_bf16 and jnp.dtype(w1.dtype).itemsize > 2:
        w1m = w1.astype(jnp.bfloat16)
        w2m = w2.astype(jnp.bfloat16)
    else:
        w1m, w2m = w1, w2

    tm_eff, th, needed, _, cap = _choose_tiles(
        m, dim, hidden, x.dtype, w1m.dtype, x.dtype, tm, hidden_tile)

    m_pad = _round_up(m, tm_eff)
    h_pad = _round_up(hidden, th)

    x2d = x.reshape(m, dim)
    if m_pad != m:
        x2d = jnp.pad(x2d, ((0, m_pad - m), (0, 0)))

    if h_pad != hidden:
        # Zero padding keeps the reduction exact: gelu(x@0 + 0) == 0 contributes 0.
        w1m = jnp.pad(w1m, ((0, h_pad - hidden), (0, 0)))
        w2m = jnp.pad(w2m, ((0, 0), (0, h_pad - hidden)))
        b1p = jnp.pad(b1, (0, h_pad - hidden))
    else:
        b1p = b1
    b1_2d = b1p.reshape(1, h_pad)
    b2_2d = b2.reshape(1, dim)

    n_m = m_pad // tm_eff
    n_h = h_pad // th
    grid = (n_m, n_h)

    # Single-buffer grid-invariant operands (halves their VMEM footprint).
    w_buf = 1 if n_h == 1 else None

    in_specs = [
        _spec((tm_eff, dim), lambda i, k: (i, 0)),               # x row tile
        _spec((th, dim), lambda i, k: (k, 0), buffers=w_buf),    # W1 slab
        _spec((1, th), lambda i, k: (0, k), buffers=w_buf),      # b1 slab
        _spec((dim, th), lambda i, k: (0, k), buffers=w_buf),    # W2 slab
        _spec((1, dim), lambda i, k: (0, 0), buffers=1),         # b2 (invariant)
    ]
    out_spec = pl.BlockSpec((tm_eff, dim), lambda i, k: (i, 0))

    x_item = jnp.dtype(x.dtype).itemsize
    w_item = jnp.dtype(w1m.dtype).itemsize
    cost = pl.CostEstimate(
        flops=4 * m * dim * hidden,
        transcendentals=(m * hidden) if approximate_gelu else 0,
        bytes_accessed=(2 * m * dim * x_item
                        + (2 * dim * hidden + hidden + dim) * w_item),
    )

    # Chip-aware scoped-VMEM budget (never above 75% of physical VMEM).
    vmem_limit = int(min(max(int(1.5 * needed), 16 * 2 ** 20), int(0.75 * cap)))

    kernel = functools.partial(_ffn_kernel, approximate_gelu=approximate_gelu)

    out2d = pl.pallas_call(
        kernel,
        out_shape=jax.ShapeDtypeStruct((m_pad, dim), x.dtype),
        grid_spec=pltpu.PrefetchScalarGridSpec(
            num_scalar_prefetch=0,
            grid=grid,
            in_specs=in_specs,
            out_specs=out_spec,
            scratch_shapes=[pltpu.VMEM((tm_eff, dim), jnp.float32)],
        ),
        compiler_params=pltpu.CompilerParams(
            dimension_semantics=("parallel", "arbitrary"),
            vmem_limit_bytes=vmem_limit,
        ),
        cost_estimate=cost,
    )(x2d, w1m, b1_2d, w2m, b2_2d)

    if m_pad != m:
        out2d = out2d[:m]
    return out2d.reshape(*lead, dim)


def feed_forward(x, w1, b1, w2, b2, *, tm=None, approximate_gelu=False,
                 cast_to_bf16=False, hidden_tile=None):
    """ViT FeedForward:  Dropout(Linear(Dropout(GELU(Linear(x)))))  with p = 0.

    x: (..., dim); w1: (hidden, dim); b1: (hidden,); w2: (dim, hidden); b2: (dim,).
    approximate_gelu=False matches torch.nn.GELU() (exact erf; VPU polynomial).
      Set True for the tanh approximation, which runs on the otherwise-idle EUP.
    cast_to_bf16=True (opt-in) runs the matmuls with bf16 operands at native MXU
      rate (f32 accumulation kept); slightly changes numerics.
    hidden_tile: optional override of the hidden-axis tile (multiple of 128 when
      smaller than hidden); by default chosen from the chip's VMEM budget.
    """
    return _feed_forward_impl(x, w1, b1, w2, b2, tm=tm,
                              approximate_gelu=approximate_gelu,
                              cast_to_bf16=cast_to_bf16,
                              hidden_tile=hidden_tile)


def _reference(x, w1, b1, w2, b2):
    xf = x.astype(jnp.float32)
    h = jnp.einsum("...d,hd->...h", xf, w1.astype(jnp.float32)) + b1.astype(jnp.float32)
    h = 0.5 * h * (1.0 + lax.erf(h / jnp.sqrt(jnp.float32(2.0))))
    y = jnp.einsum("...h,dh->...d", h, w2.astype(jnp.float32)) + b2.astype(jnp.float32)
    return y.astype(x.dtype)


if __name__ == "__main__":
    # Small shapes consistent with the ViT FeedForward input (batch, seq, dim).
    B, S, dim, hidden = 2, 8, 32, 64

    key = jax.random.PRNGKey(0)
    kx, kw1, kb1, kw2, kb2 = jax.random.split(key, 5)

    x = jax.random.normal(kx, (B, S, dim), dtype=jnp.float32)

    # Deterministic init mimicking nn.Linear's uniform(-1/sqrt(fan_in), 1/sqrt(fan_in)).
    lim1 = 1.0 / jnp.sqrt(jnp.float32(dim))
    lim2 = 1.0 / jnp.sqrt(jnp.float32(hidden))
    w1 = jax.random.uniform(kw1, (hidden, dim), jnp.float32, -lim1, lim1)
    b1 = jax.random.uniform(kb1, (hidden,), jnp.float32, -lim1, lim1)
    w2 = jax.random.uniform(kw2, (dim, hidden), jnp.float32, -lim2, lim2)
    b2 = jax.random.uniform(kb2, (dim,), jnp.float32, -lim2, lim2)

    # 1) default f32 path (exact torch parity).
    out = jax.block_until_ready(feed_forward(x, w1, b1, w2, b2))
    ref = _reference(x, w1, b1, w2, b2)
    assert out.shape == (B, S, dim)
    assert jnp.allclose(out, ref, atol=1e-4, rtol=1e-4), "mismatch vs reference"

    # 2) non-divisible token count (cdiv + row padding path).
    x_odd = jax.random.normal(kx, (1, 13, dim), dtype=jnp.float32)
    out_odd = jax.block_until_ready(feed_forward(x_odd, w1, b1, w2, b2))
    ref_odd = _reference(x_odd, w1, b1, w2, b2)
    assert out_odd.shape == (1, 13, dim)
    assert jnp.allclose(out_odd, ref_odd, atol=1e-4, rtol=1e-4), "mismatch (padded rows)"

    # 3) opt-in bf16 matmul operands (native MXU rate), f32 accumulation.
    out_bf = jax.block_until_ready(feed_forward(x, w1, b1, w2, b2, cast_to_bf16=True))
    assert jnp.allclose(out_bf, ref, atol=3e-2, rtol=3e-2), "mismatch (bf16 operands)"

    # 4) bf16 activations exercise the dtype-aware row padding (16-row multiple).
    x_bf = x.astype(jnp.bfloat16)
    out_act = jax.block_until_ready(feed_forward(x_bf, w1, b1, w2, b2))
    ref_act = _reference(x_bf, w1, b1, w2, b2)
    assert jnp.allclose(out_act.astype(jnp.float32), ref_act.astype(jnp.float32),
                        atol=3e-2, rtol=3e-2), "mismatch (bf16 activations)"

    # 5) hidden-axis tiled reduction path (accumulator + pl.when init/finalize),
    #    including a hidden dim that does not divide the tile (zero-padded weights).
    for hid in (256, 200):
        kw1b, kb1b, kw2b = jax.random.split(jax.random.PRNGKey(1), 3)
        lim1b = 1.0 / jnp.sqrt(jnp.float32(dim))
        lim2b = 1.0 / jnp.sqrt(jnp.float32(hid))
        w1b = jax.random.uniform(kw1b, (hid, dim), jnp.float32, -lim1b, lim1b)
        b1b = jax.random.uniform(kb1b, (hid,), jnp.float32, -lim1b, lim1b)
        w2b = jax.random.uniform(kw2b, (dim, hid), jnp.float32, -lim2b, lim2b)
        out_t = jax.block_until_ready(
            feed_forward(x, w1b, b1b, w2b, b2, hidden_tile=128))
        ref_t = _reference(x, w1b, b1b, w2b, b2)
        assert jnp.allclose(out_t, ref_t, atol=1e-4, rtol=1e-4), \
            f"mismatch (hidden-tiled path, hidden={hid})"

    print("KERNEL_OK")
</pallas_src>

<mosaic_0001>
module attributes {stable_mosaic.version = 11 : i64} {
  func.func @_ffn_kernel(%arg0: i32, %arg1: i32, %arg2: memref<8x32xf32, #tpu.memory_space<vmem>>, %arg3: memref<64x32xf32, #tpu.memory_space<vmem>>, %arg4: memref<1x64xf32, #tpu.memory_space<vmem>>, %arg5: memref<32x64xf32, #tpu.memory_space<vmem>>, %arg6: memref<1x32xf32, #tpu.memory_space<vmem>>, %arg7: memref<8x32xf32, #tpu.memory_space<vmem>>, %arg8: memref<8x32xf32, #tpu.memory_space<vmem>>) attributes {dimension_semantics = [#tpu.dimension_semantics<parallel>, #tpu.dimension_semantics<arbitrary>], iteration_bounds = array<i64: 2, 1>, scalar_prefetch = 0 : i64, scratch_operands = 1 : i64, tpu.core_type = #tpu.core_type<tc>, window_params = [{transform_indices = @transform_0, window_bounds = array<i64: 8, 32>}, {pipeline_mode = #tpu.pipeline_mode<synchronous>, transform_indices = @transform_1, window_bounds = array<i64: 64, 32>}, {pipeline_mode = #tpu.pipeline_mode<synchronous>, transform_indices = @transform_2, window_bounds = array<i64: 1, 64>}, {pipeline_mode = #tpu.pipeline_mode<synchronous>, transform_indices = @transform_3, window_bounds = array<i64: 32, 64>}, {pipeline_mode = #tpu.pipeline_mode<synchronous>, transform_indices = @transform_4, window_bounds = array<i64: 1, 32>}, {transform_indices = @transform_5, window_bounds = array<i64: 8, 32>}]} {
    %c0_i32 = arith.constant 0 : i32
    %0 = arith.cmpi eq, %arg1, %c0_i32 : i32
    %1 = arith.extui %0 : i1 to i32
    %c0_i32_0 = arith.constant 0 : i32
    %2 = arith.cmpi ne, %1, %c0_i32_0 : i32
    scf.if %2 {
      %cst_18 = arith.constant 0.000000e+00 : f32
      %25 = vector.broadcast %cst_18 : f32 to vector<8x32xf32>
      %c0_19 = arith.constant 0 : index
      %c0_20 = arith.constant 0 : index
      %26 = vector.load %arg8[%c0_19, %c0_20] : memref<8x32xf32, #tpu.memory_space<vmem>>, vector<8x32xf32>
      tpu.vector_store %arg8[%c0_19, %c0_20], %25 {strides = array<i32>} : memref<8x32xf32, #tpu.memory_space<vmem>>, vector<8x32xf32>,
    } else {
    }
    %c0 = arith.constant 0 : index
    %c0_1 = arith.constant 0 : index
    %3 = vector.load %arg2[%c0, %c0_1] : memref<8x32xf32, #tpu.memory_space<vmem>>, vector<8x32xf32>
    %c0_2 = arith.constant 0 : index
    %c0_3 = arith.constant 0 : index
    %4 = vector.load %arg3[%c0_2, %c0_3] : memref<64x32xf32, #tpu.memory_space<vmem>>, vector<64x32xf32>
    %cst = arith.constant dense<0.000000e+00> : vector<8x64xf32>
    %5 = tpu.matmul %3, %4, %cst {dimension_numbers = #tpu.dot_dimension_numbers<[1], [1], [0], [0], [0, 0, 1, 0], [], []>} : vector<8x32xf32>, vector<64x32xf32>, vector<8x64xf32> -> vector<8x64xf32>
    %c0_4 = arith.constant 0 : index
    %c0_5 = arith.constant 0 : index
    %6 = vector.load %arg4[%c0_4, %c0_5] : memref<1x64xf32, #tpu.memory_space<vmem>>, vector<1x64xf32>
    %7 = vector.broadcast %6 : vector<1x64xf32> to vector<8x64xf32>
    %8 = arith.addf %5, %7 : vector<8x64xf32>
    %cst_6 = arith.constant 5.000000e-01 : f32
    %9 = vector.broadcast %cst_6 : f32 to vector<8x64xf32>
    %10 = arith.mulf %9, %8 : vector<8x64xf32>
    %cst_7 = arith.constant 0.707106769 : f32
    %11 = vector.broadcast %cst_7 : f32 to vector<8x64xf32>
    %12 = arith.mulf %8, %11 : vector<8x64xf32>
    %13 = math.erf %12 : vector<8x64xf32>
    %cst_8 = arith.constant 1.000000e+00 : f32
    %14 = vector.broadcast %cst_8 : f32 to vector<8x64xf32>
    %15 = arith.addf %14, %13 : vector<8x64xf32>
    %16 = arith.mulf %10, %15 : vector<8x64xf32>
    %c0_9 = arith.constant 0 : index
    %c0_10 = arith.constant 0 : index
    %17 = vector.load %arg8[%c0_9, %c0_10] : memref<8x32xf32, #tpu.memory_space<vmem>>, vector<8x32xf32>
    %c0_11 = arith.constant 0 : index
    %c0_12 = arith.constant 0 : index
    %18 = vector.load %arg5[%c0_11, %c0_12] : memref<32x64xf32, #tpu.memory_space<vmem>>, vector<32x64xf32>
    %cst_13 = arith.constant dense<0.000000e+00> : vector<8x32xf32>
    %19 = tpu.matmul %16, %18, %cst_13 {dimension_numbers = #tpu.dot_dimension_numbers<[1], [1], [0], [0], [0, 0, 1, 0], [], []>} : vector<8x64xf32>, vector<32x64xf32>, vector<8x32xf32> -> vector<8x32xf32>
    %20 = arith.addf %17, %19 : vector<8x32xf32>
    %c0_14 = arith.constant 0 : index
    %c0_15 = arith.constant 0 : index
    %21 = vector.load %arg8[%c0_14, %c0_15] : memref<8x32xf32, #tpu.memory_space<vmem>>, vector<8x32xf32>
    tpu.vector_store %arg8[%c0_14, %c0_15], %20 {strides = array<i32>} : memref<8x32xf32, #tpu.memory_space<vmem>>, vector<8x32xf32>,
    %c0_i32_16 = arith.constant 0 : i32
    %22 = arith.cmpi eq, %arg1, %c0_i32_16 : i32
    %23 = arith.extui %22 : i1 to i32
    %c0_i32_17 = arith.constant 0 : i32
    %24 = arith.cmpi ne, %23, %c0_i32_17 : i32
    scf.if %24 {
      %c0_18 = arith.constant 0 : index
      %c0_19 = arith.constant 0 : index
      %25 = vector.load %arg8[%c0_18, %c0_19] : memref<8x32xf32, #tpu.memory_space<vmem>>, vector<8x32xf32>
      %c0_20 = arith.constant 0 : index
      %c0_21 = arith.constant 0 : index
      %26 = vector.load %arg6[%c0_20, %c0_21] : memref<1x32xf32, #tpu.memory_space<vmem>>, vector<1x32xf32>
      %27 = vector.broadcast %26 : vector<1x32xf32> to vector<8x32xf32>
      %28 = arith.addf %25, %27 : vector<8x32xf32>
      %c0_22 = arith.constant 0 : index
      %c0_23 = arith.constant 0 : index
      %29 = vector.load %arg7[%c0_22, %c0_23] : memref<8x32xf32, #tpu.memory_space<vmem>>, vector<8x32xf32>
      tpu.vector_store %arg7[%c0_22, %c0_23], %28 {strides = array<i32>} : memref<8x32xf32, #tpu.memory_space<vmem>>, vector<8x32xf32>,
    } else {
    }
    return
  }
  func.func @transform_0(%arg0: i32, %arg1: i32) -> (i32, i32) {
    %c0_i32 = arith.constant 0 : i32
    %c0_i32_0 = arith.constant 0 : i32
    return %arg0, %c0_i32 : i32, i32
  }
  func.func @transform_1(%arg0: i32, %arg1: i32) -> (i32, i32) {
    %c0_i32 = arith.constant 0 : i32
    %c0_i32_0 = arith.constant 0 : i32
    return %arg1, %c0_i32 : i32, i32
  }
  func.func @transform_2(%arg0: i32, %arg1: i32) -> (i32, i32) {
    %c0_i32 = arith.constant 0 : i32
    %c0_i32_0 = arith.constant 0 : i32
    return %c0_i32, %arg1 : i32, i32
  }
  func.func @transform_3(%arg0: i32, %arg1: i32) -> (i32, i32) {
    %c0_i32 = arith.constant 0 : i32
    %c0_i32_0 = arith.constant 0 : i32
    return %c0_i32, %arg1 : i32, i32
  }
  func.func @transform_4(%arg0: i32, %arg1: i32) -> (i32, i32) {
    %c0_i32 = arith.constant 0 : i32
    %c0_i32_0 = arith.constant 0 : i32
    %c0_i32_1 = arith.constant 0 : i32
    return %c0_i32, %c0_i32_0 : i32, i32
  }
  func.func @transform_5(%arg0: i32, %arg1: i32) -> (i32, i32) {
    %c0_i32 = arith.constant 0 : i32
    %c0_i32_0 = arith.constant 0 : i32
    return %arg0, %c0_i32 : i32, i32
  }
}

</mosaic_0001>

<llo_original>
// kernel: _feed_forward_impl.1
$region0: #{_feed_forward_impl.1}
  #allocation0 [shape = 'u32[]', space=smem, size = 0x4, offset = 0x4, fixed_abs, tag = 'smem constant byte address 0x4 - core index']
  #allocation1 [shape = 'u32[144,128]{1,0:T(1,128)}', space=vmem, size = 0x12000, scoped, tag = 'internal scratch']
  #allocation2 [shape = 'f32[8,32]{1,0:T(8,128)}', space=vmem, size = 0x1000, scoped, tag = 'scratch operand']
  %s0 = inlined_call_operand.vmem [shape: f32[16,32], index: 0, kind: input, shape index: {}]
  %s1 = inlined_call_operand.vmem [shape: f32[64,32], index: 1, kind: input, shape index: {}]
  %s2 = inlined_call_operand.vmem [shape: f32[1,64], index: 2, kind: input, shape index: {}]
  %s3 = inlined_call_operand.vmem [shape: f32[32,64], index: 3, kind: input, shape index: {}]
  %s4 = inlined_call_operand.vmem [shape: f32[1,32], index: 4, kind: input, shape index: {}]
  %s5 = inlined_call_operand.hbm [shape: f32[16,32], index: 5, kind: output, shape index: {}]
  %s6 = sld [smem:[#allocation0]]
  $region61: #{_feed_forward_impl.1} parent=0
    _
  %s8 = ssub.s32 1, %s6
  %s9 = scalar_select 0, %s8, %s6
  $region1: #{_feed_forward_impl.1} parent=0
    #allocation3 [shape = 'u8[8192]{0}', space=vmem, size = 0x2000, scoped, tag = 'output window, operand 0']
    #allocation4 [shape = 's32[2]{0}', space=sflag, size = 0x8, scoped, tag = 'scoped memory for _feed_forward_impl.1']
    %10 = vsyncpa [#allocation4], 0
    %s11 = scalar_lea.sflag [#allocation4], 1
    %12 = vsyncpa %s11, 0
    loop: start=0, step=1, limit=4
    $region2: #{_feed_forward_impl.1} parent=1 // loop_pre_header
      _
    $region3: #{_feed_forward_impl.1} parent=1 // loop_header
      %s14 = sphi 0, %s18
      %p15 = scmp.ge.s32.totalorder %s14, 4
      %s21 = sphi 0, %s33
      %s22 = sphi 0, %s29
      %s23 = sphi 0, %s21
      %s24 = sphi 0, %s22
      %s25 = sphi 0, %s23
      %s26 = sphi 0, %s24
      %s36 = sphi 0, %s38
      %s39 = sphi 0, %s36
      %s40 = sphi 0, %s39
      %s56 = sphi 0, %s40
      %s62 = sphi 0, %s64
      %s65 = sphi 0, %s62
      %s66 = sphi 0, %s65
      %s82 = sphi 0, %s66
      %s88 = sphi 0, %s90
      %s91 = sphi 0, %s88
      %s92 = sphi 0, %s91
      %s108 = sphi 0, %s92
      %s114 = sphi 0, %s116
      %s117 = sphi 0, %s114
      %s118 = sphi 0, %s117
      %s134 = sphi 0, %s118
      %s138 = sphi 0, %s138
      %s140 = sphi 0, %s138
      %s141 = sphi 0, %s140
      %s155 = sphi 0, %s141
      %s161 = sphi 0, %s163
      %s164 = sphi 0, %s161
      %s165 = sphi 0, %s164
      %s181 = sphi 0, %s165
    $region4: #{_feed_forward_impl.1} parent=1 // loop_header_branch
      %17 = sbr.rel (%p15) target = $region8
    $region5: #{_feed_forward_impl.1} parent=1 // loop_body
      %s19 = ssub.s32 %s14, 1
      %s20 = ssub.s32 %s14, 2
      %s27 = sadd.s32 1, %s22
      %p28 = scmp.ge.s32.totalorder %s27, 1
      %s29 = scalar_select %p28, 0, %s27
      %s30 = sadd.s32 1, %s21
      %s31 = scalar_select %p28, %s30, %s21
      %p32 = scmp.ge.s32.totalorder %s31, 2
      %s33 = scalar_select %p32, 0, %s31
      %s34 = ssub.s32 %s21, %s33
      %p35 = scmp.eq.s32.totalorder %s34, 0
      %s37 = sadd.s32 %s36, 1
      %s38 = scalar_select %p35, %s36, %s37
      %p41 = pneg %p35
      %p42 = scmp.eq.s32.totalorder %s14, 1
      %p43 = por %p41, %p42
      %p44 = scmp.ne.s32.totalorder %s36, %s39
      %p45 = scmp.eq.s32.totalorder %s14, 0
      %p46 = por %p44, %p45
      %p47 = scmp.ne.s32.totalorder %s36, %s39
      %p48 = scmp.eq.s32.totalorder %s19, 1
      %p49 = por %p47, %p48
      %p50 = scmp.ne.s32.totalorder %s39, %s40
      %p51 = scmp.eq.s32.totalorder %s19, 0
      %p52 = por %p50, %p51
      %p53 = scmp.ne.s32.totalorder %s39, %s40
      %p54 = scmp.eq.s32.totalorder %s20, 1
      %p55 = por %p53, %p54
      %p57 = scmp.ne.s32.totalorder %s40, %s56
      %p58 = scmp.eq.s32.totalorder %s20, 0
      %p59 = por %p57, %p58
      %s60 = ssub.s32 %s22, %s29
      %p61 = scmp.eq.s32.totalorder %s60, 0
      %s63 = sadd.s32 %s62, 1
      %s64 = scalar_select %p61, %s62, %s63
      %p67 = pneg %p61
      %p68 = scmp.eq.s32.totalorder %s14, 1
      %p69 = por %p67, %p68
      %p70 = scmp.ne.s32.totalorder %s62, %s65
      %p71 = scmp.eq.s32.totalorder %s14, 0
      %p72 = por %p70, %p71
      %p73 = scmp.ne.s32.totalorder %s62, %s65
      %p74 = scmp.eq.s32.totalorder %s19, 1
      %p75 = por %p73, %p74
      %p76 = scmp.ne.s32.totalorder %s65, %s66
      %p77 = scmp.eq.s32.totalorder %s19, 0
      %p78 = por %p76, %p77
      %p79 = scmp.ne.s32.totalorder %s65, %s66
      %p80 = scmp.eq.s32.totalorder %s20, 1
      %p81 = por %p79, %p80
      %p83 = scmp.ne.s32.totalorder %s66, %s82
      %p84 = scmp.eq.s32.totalorder %s20, 0
      %p85 = por %p83, %p84
      %s86 = ssub.s32 %s22, %s29
      %p87 = scmp.eq.s32.totalorder %s86, 0
      %s89 = sadd.s32 %s88, 1
      %s90 = scalar_select %p87, %s88, %s89
      %p93 = pneg %p87
      %p94 = scmp.eq.s32.totalorder %s14, 1
      %p95 = por %p93, %p94
      %p96 = scmp.ne.s32.totalorder %s88, %s91
      %p97 = scmp.eq.s32.totalorder %s14, 0
      %p98 = por %p96, %p97
      %p99 = scmp.ne.s32.totalorder %s88, %s91
      %p100 = scmp.eq.s32.totalorder %s19, 1
      %p101 = por %p99, %p100
      %p102 = scmp.ne.s32.totalorder %s91, %s92
      %p103 = scmp.eq.s32.totalorder %s19, 0
      %p104 = por %p102, %p103
      %p105 = scmp.ne.s32.totalorder %s91, %s92
      %p106 = scmp.eq.s32.totalorder %s20, 1
      %p107 = por %p105, %p106
      %p109 = scmp.ne.s32.totalorder %s92, %s108
      %p110 = scmp.eq.s32.totalorder %s20, 0
      %p111 = por %p109, %p110
      %s112 = ssub.s32 %s22, %s29
      %p113 = scmp.eq.s32.totalorder %s112, 0
      %s115 = sadd.s32 %s114, 1
      %s116 = scalar_select %p113, %s114, %s115
      %p119 = pneg %p113
      %p120 = scmp.eq.s32.totalorder %s14, 1
      %p121 = por %p119, %p120
      %p122 = scmp.ne.s32.totalorder %s114, %s117
      %p123 = scmp.eq.s32.totalorder %s14, 0
      %p124 = por %p122, %p123
      %p125 = scmp.ne.s32.totalorder %s114, %s117
      %p126 = scmp.eq.s32.totalorder %s19, 1
      %p127 = por %p125, %p126
      %p128 = scmp.ne.s32.totalorder %s117, %s118
      %p129 = scmp.eq.s32.totalorder %s19, 0
      %p130 = por %p128, %p129
      %p131 = scmp.ne.s32.totalorder %s117, %s118
      %p132 = scmp.eq.s32.totalorder %s20, 1
      %p133 = por %p131, %p132
      %p135 = scmp.ne.s32.totalorder %s118, %s134
      %p136 = scmp.eq.s32.totalorder %s20, 0
      %p137 = por %p135, %p136
      %s139 = sadd.s32 %s138, 1
      %p142 = scmp.eq.s32.totalorder %s14, 1
      %p143 = scmp.ne.s32.totalorder %s138, %s140
      %p144 = scmp.eq.s32.totalorder %s14, 0
      %p145 = por %p143, %p144
      %p146 = scmp.ne.s32.totalorder %s138, %s140
      %p147 = scmp.eq.s32.totalorder %s19, 1
      %p148 = por %p146, %p147
      %p149 = scmp.ne.s32.totalorder %s140, %s141
      %p150 = scmp.eq.s32.totalorder %s19, 0
      %p151 = por %p149, %p150
      %p152 = scmp.ne.s32.totalorder %s140, %s141
      %p153 = scmp.eq.s32.totalorder %s20, 1
      %p154 = por %p152, %p153
      %p156 = scmp.ne.s32.totalorder %s141, %s155
      %p157 = scmp.eq.s32.totalorder %s20, 0
      %p158 = por %p156, %p157
      %s159 = ssub.s32 %s21, %s33
      %p160 = scmp.eq.s32.totalorder %s159, 0
      %s162 = sadd.s32 %s161, 1
      %s163 = scalar_select %p160, %s161, %s162
      %p166 = pneg %p160
      %p167 = scmp.eq.s32.totalorder %s14, 1
      %p168 = por %p166, %p167
      %p169 = scmp.ne.s32.totalorder %s161, %s164
      %p170 = scmp.eq.s32.totalorder %s14, 0
      %p171 = por %p169, %p170
      %p172 = scmp.ne.s32.totalorder %s161, %s164
      %p173 = scmp.eq.s32.totalorder %s19, 1
      %p174 = por %p172, %p173
      %p175 = scmp.ne.s32.totalorder %s164, %s165
      %p176 = scmp.eq.s32.totalorder %s19, 0
      %p177 = por %p175, %p176
      %p178 = scmp.ne.s32.totalorder %s164, %s165
      %p179 = scmp.eq.s32.totalorder %s20, 1
      %p180 = por %p178, %p179
      %p182 = scmp.ne.s32.totalorder %s165, %s181
      %p183 = scmp.eq.s32.totalorder %s20, 0
      %p184 = por %p182, %p183
      %p185 = scmp.le.s32.totalorder 1, %s14
      %p186 = scmp.lt.s32.totalorder %s14, 3
      %p187 = pnand %p185, %p186
      %p188 = pneg %p187
      // Predicated region
      $region9: #{_feed_forward_impl.1} parent=5 // pred_check
        _
      $region10: #{_feed_forward_impl.1} parent=5 // pred_check_branch
        %190 = sbr.rel (%p187) target = $region12
      $region11: #{_feed_forward_impl.1} parent=5 // pred_region
        %s191 = ssub.s32 %s14, 1
        // Predicated region
        $region13: #{_feed_forward_impl.1} parent=11 // pred_check
          %p192 = pneg %p78
        $region14: #{_feed_forward_impl.1} parent=11 // pred_check_branch
          %194 = sbr.rel (%p192) target = $region16
        $region15: #{_feed_forward_impl.1} parent=11 // pred_region
          %s195 = smul.u32 8, %s24
          %p196 = scmp.lt.s32.totalorder %s195, 7
          %s197 = scalar_select %p196, %s195, 7
          %s198 = smul.addr %s197, 8
          %s199 = scalar_lea.vmem %s1, %s198
          %s200 = smul.u32 8, %s24
        $region16: #{_feed_forward_impl.1} parent=11 // pred_fallthru
          _
        // Predicated region
        $region17: #{_feed_forward_impl.1} parent=11 // pred_check
          %p201 = pneg %p104
        $region18: #{_feed_forward_impl.1} parent=11 // pred_check_branch
          %203 = sbr.rel (%p201) target = $region20
        $region19: #{_feed_forward_impl.1} parent=11 // pred_region
          %p204 = scmp.lt.s32.totalorder %s24, 0
          %s205 = scalar_select %p204, %s24, 0
          %s206 = scalar_lea.vmem %s2, %s205
        $region20: #{_feed_forward_impl.1} parent=11 // pred_fallthru
          _
        // Predicated region
        $region21: #{_feed_forward_impl.1} parent=11 // pred_check
          %p207 = pneg %p130
        $region22: #{_feed_forward_impl.1} parent=11 // pred_check_branch
          %209 = sbr.rel (%p207) target = $region24
        $region23: #{_feed_forward_impl.1} parent=11 // pred_region
          %p210 = scmp.lt.s32.totalorder %s24, 0
          %s211 = scalar_select %p210, %s24, 0
          %s212 = smul.addr %s211, 8
          %s213 = scalar_lea.vmem %s3, %s212
        $region24: #{_feed_forward_impl.1} parent=11 // pred_fallthru
          _
        // Predicated region
        $region25: #{_feed_forward_impl.1} parent=11 // pred_check
          %p214 = pneg %p151
        $region26: #{_feed_forward_impl.1} parent=11 // pred_check_branch
          %216 = sbr.rel (%p214) target = $region28
        $region27: #{_feed_forward_impl.1} parent=11 // pred_region
          _
        $region28: #{_feed_forward_impl.1} parent=11 // pred_fallthru
          _
      $region12: #{_feed_forward_impl.1} parent=5 // pred_fallthru
        _
      %p217 = scmp.lt.s32.totalorder %s14, 2
      // Predicated region
      $region29: #{_feed_forward_impl.1} parent=5 // pred_check
        %p218 = pneg %p217
      $region30: #{_feed_forward_impl.1} parent=5 // pred_check_branch
        %220 = sbr.rel (%p218) target = $region32
      $region31: #{_feed_forward_impl.1} parent=5 // pred_region
        // Predicated region
        $region33: #{_feed_forward_impl.1} parent=31 // pred_check
          %p221 = pneg %p46
        $region34: #{_feed_forward_impl.1} parent=31 // pred_check_branch
          %223 = sbr.rel (%p221) target = $region36
        $region35: #{_feed_forward_impl.1} parent=31 // pred_region
          %p224 = scmp.lt.s32.totalorder %s21, 1
          %s225 = scalar_select %p224, %s21, 1
          %s226 = smul.addr %s225, 8
          %s227 = scalar_lea.vmem %s0, %s226
        $region36: #{_feed_forward_impl.1} parent=31 // pred_fallthru
          _
      $region32: #{_feed_forward_impl.1} parent=5 // pred_fallthru
        _
      %p228 = scmp.le.s32.totalorder 1, %s14
      %p229 = scmp.lt.s32.totalorder %s14, 3
      %p230 = pnand %p228, %p229
      %p231 = pneg %p230
      // Predicated region
      $region37: #{_feed_forward_impl.1} parent=5 // pred_check
        _
      $region38: #{_feed_forward_impl.1} parent=5 // pred_check_branch
        %233 = sbr.rel (%p230) target = $region40
      $region39: #{_feed_forward_impl.1} parent=5 // pred_region
        %s234 = ssub.s32 %s14, 1
        %p235 = scmp.lt.s32.totalorder %s23, 1
        %s236 = scalar_select %p235, %s23, 1
        %s237 = smul.addr %s236, 8
        %s238 = scalar_lea.vmem %s0, %s237
        %p239 = pneg %p52
        %p240 = pneg %p49
        %s241 = smul.u32 8, %s24
        %p242 = scmp.lt.s32.totalorder %s241, 7
        %s243 = scalar_select %p242, %s241, 7
        %s244 = smul.addr %s243, 8
        %s245 = scalar_lea.vmem %s1, %s244
        %p246 = pneg %p78
        %p247 = pneg %p75
        %p248 = scmp.lt.s32.totalorder %s24, 0
        %s249 = scalar_select %p248, %s24, 0
        %s250 = scalar_lea.vmem %s2, %s249
        %p251 = pneg %p104
        %p252 = pneg %p101
        %p253 = scmp.lt.s32.totalorder %s24, 0
        %s254 = scalar_select %p253, %s24, 0
        %s255 = smul.addr %s254, 8
        %s256 = scalar_lea.vmem %s3, %s255
        %p257 = pneg %p130
        %p258 = pneg %p127
        %p259 = pneg %p151
        %p260 = pneg %p148
        %p261 = pneg %p177
        %p262 = pneg %p174
        %s263 = sand.u32 %s164, 1
        %s264 = scalar_lea.sflag [#allocation4], %s263
        %s265 = sand.u32 %s164, 1
        %s266 = smul.addr %s265, 8
        %s267 = scalar_lea.vmem [#allocation3], %s266
        %p268 = scmp.lt.s32.totalorder %s23, 1
        %s269 = scalar_select %p268, %s23, 1
        %s270 = smul.addr %s269, 8
        %s271 = scalar_lea.vmem %s0, %s270
        %s272 = smul.u32 8, %s24
        %p273 = scmp.lt.s32.totalorder %s272, 7
        %s274 = scalar_select %p273, %s272, 7
        %s275 = smul.addr %s274, 8
        %s276 = scalar_lea.vmem %s1, %s275
        %s277 = smul.u32 8, %s24
        %p278 = scmp.lt.s32.totalorder %s24, 0
        %s279 = scalar_select %p278, %s24, 0
        %s280 = scalar_lea.vmem %s2, %s279
        %p281 = scmp.lt.s32.totalorder %s24, 0
        %s282 = scalar_select %p281, %s24, 0
        %s283 = smul.addr %s282, 8
        %s284 = scalar_lea.vmem %s3, %s283
        %p285 = scmp.eq.s32.totalorder %s24, 0
        // Predicated region
        $region41: #{_feed_forward_impl.1} parent=39 // pred_check
          %p286 = pneg %p285
        $region42: #{_feed_forward_impl.1} parent=39 // pred_check_branch
          %288 = sbr.rel (%p286) target = $region44
        $region43: #{_feed_forward_impl.1} parent=39 // pred_region
          %vm289 = vcmask 261120
          %290 = vst.msk [vmem:[#allocation2] sm:$0xff] %vm289, 0.0
        $region44: #{_feed_forward_impl.1} parent=39 // pred_fallthru
          _
        %v291 = vld [vmem:[%s271] sm:$0xff]
        %v292 = vld [vmem:[%s276] sm:$0xff]
        %v293 = vld [vmem:[%s276 + $0x8] sm:$0xff]
        %v294 = vld [vmem:[%s276 + $0x10] sm:$0xff]
        %v295 = vld [vmem:[%s276 + $0x18] sm:$0xff]
        %v296 = vld [vmem:[%s276 + $0x20] sm:$0xff]
        %v297 = vld [vmem:[%s276 + $0x28] sm:$0xff]
        %v298 = vld [vmem:[%s276 + $0x30] sm:$0xff]
        %v299 = vld [vmem:[%s276 + $0x38] sm:$0xff]
        %v300 = vld [vmem:[%s280] sm:$0x1]
        %v302 = vlaneseq
        %v303 = vshrl.u32 %v302, 7
        %v304 = vsub.s32 0, %v303
        %v305 = vrot.slane %v300, %v304
        %vm307 = vcmask 261120
        %v309 = vsel %vm307, %v291, 0
        %v312 = vsel %vm307, %v292, 0
        %v315 = vsel %vm307, %v293, 0
        %v318 = vsel %vm307, %v294, 0
        %v321 = vsel %vm307, %v295, 0
        %v324 = vsel %vm307, %v296, 0
        %v327 = vsel %vm307, %v297, 0
        %v330 = vsel %vm307, %v298, 0
        %v333 = vsel %vm307, %v299, 0
        %335 = vmatprep.subr.mxu0 0.0
        %336 = vmatpush1.xpose.msra.mxu0 %v312
        %337 = vmatprep.subr.mxu0 0.0
        %338 = vmatpush1.xpose.msra.mxu0 %v315
        %339 = vmatprep.subr.mxu0 0.0
        %340 = vmatpush1.xpose.msra.mxu0 %v318
        %341 = vmatprep.subr.mxu0 0.0
        %342 = vmatpush1.xpose.msra.mxu0 %v321
        %343 = vmatprep.subr.mxu0 0.0
        %344 = vmatpush1.xpose.msra.mxu0 %v324
        %345 = vmatprep.subr.mxu0 0.0
        %346 = vmatpush1.xpose.msra.mxu0 %v327
        %347 = vmatprep.subr.mxu0 0.0
        %348 = vmatpush1.xpose.msra.mxu0 %v330
        %349 = vmatprep.subr.mxu0 0.0
        %350 = vmatpush1.xpose.msra.mxu0 %v333
        %351 = vmatprep.subr.mxu0 0.0
        %352 = vmatpush1.xpose.msra.mxu0 0.0
        %353 = vmatprep.subr.mxu0 0.0
        %354 = vmatpush1.xpose.msra.mxu0 0.0
        %355 = vmatprep.subr.mxu0 0.0
        %356 = vmatpush1.xpose.msra.mxu0 0.0
        %357 = vmatprep.subr.mxu0 0.0
        %358 = vmatpush1.xpose.msra.mxu0 0.0
        %359 = vmatprep.subr.mxu0 0.0
        %360 = vmatpush1.xpose.msra.mxu0 0.0
        %361 = vmatprep.subr.mxu0 0.0
        %362 = vmatpush1.xpose.msra.mxu0 0.0
        %363 = vmatprep.subr.mxu0 0.0
        %364 = vmatpush1.xpose.msra.mxu0 0.0
        %365 = vmatprep.subr.mxu0 0.0
        %366 = vmatpush1.xpose.msra.mxu0 0.0
        %367 = vmatprep.subr.mxu0 0.0
        %368 = vmatpush1.xpose.msra.mxu0 0.0
        %369 = vmatprep.subr.mxu0 0.0
        %370 = vmatpush1.xpose.msra.mxu0 0.0
        %371 = vmatprep.subr.mxu0 0.0
        %372 = vmatpush1.xpose.msra.mxu0 0.0
        %373 = vmatprep.subr.mxu0 0.0
        %374 = vmatpush1.xpose.msra.mxu0 0.0
        %375 = vmatprep.subr.mxu0 0.0
        %376 = vmatpush1.xpose.msra.mxu0 0.0
        %377 = vmatprep.subr.mxu0 0.0
        %378 = vmatpush1.xpose.msra.mxu0 0.0
        %379 = vmatprep.subr.mxu0 0.0
        %380 = vmatpush1.xpose.msra.mxu0 0.0
        %381 = vmatprep.subr.mxu0 0.0
        %382 = vmatpush1.xpose.msra.mxu0 0.0
        %383 = vmatprep.subr.mxu0 0.0
        %384 = vmatpush1.xpose.msra.mxu0 0.0
        %385 = vmatprep.subr.mxu0 0.0
        %386 = vmatpush1.xpose.msra.mxu0 0.0
        %387 = vmatprep.subr.mxu0 0.0
        %388 = vmatpush1.xpose.msra.mxu0 0.0
        %389 = vmatprep.subr.mxu0 0.0
        %390 = vmatpush1.xpose.msra.mxu0 0.0
        %391 = vmatprep.subr.mxu0 0.0
        %392 = vmatpush1.xpose.msra.mxu0 0.0
        %393 = vmatprep.subr.mxu0 0.0
        %394 = vmatpush1.xpose.msra.mxu0 0.0
        %395 = vmatprep.subr.mxu0 0.0
        %396 = vmatpush1.xpose.msra.mxu0 0.0
        %397 = vmatprep.subr.mxu0 0.0
        %398 = vmatpush1.xpose.msra.mxu0 0.0
        %399 = vmatprep.mubr.f32.mxu0 0.0
        %400 = vmatmul.mubr.f32.gmra.mrb[0].mxu0 %v309
        %v401 = vpop.f32.mrb[0].mxu0
        %v402 = vadd.f32 %v305, %v401
        %v403 = vpop.f32.mrb[0].mxu0
        %404 = vdwg.mxu0
        %v405 = vmul.f32 %v402, 0.5
        %v406 = vmul.f32 %v402, 0.70710677
        %v407 = verf.f32.pop %v406
        %v408 = vadd.f32 %v407, 1.0
        %v409 = vmul.f32 %v405, %v408
        %v410 = vld [vmem:[#allocation2] sm:$0xff]
        %v411 = vld [vmem:[%s284] sm:$0xff]
        %v412 = vld [vmem:[%s284 + $0x8] sm:$0xff]
        %v413 = vld [vmem:[%s284 + $0x10] sm:$0xff]
        %v414 = vld [vmem:[%s284 + $0x18] sm:$0xff]
        %vm415 = vcmask 523264
        %v417 = vsel %vm415, %v409, 0
        %v420 = vsel %vm415, %v411, 0
        %v423 = vsel %vm415, %v412, 0
        %v426 = vsel %vm415, %v413, 0
        %v429 = vsel %vm415, %v414, 0
        %431 = vmatprep.subr.mxu0 0.0
        %432 = vmatpush1.xpose.msra.mxu0 %v420
        %433 = vmatprep.subr.mxu0 0.0
        %434 = vmatpush1.xpose.msra.mxu0 %v423
        %435 = vmatprep.subr.mxu0 0.0
        %436 = vmatpush1.xpose.msra.mxu0 %v426
        %437 = vmatprep.subr.mxu0 0.0
        %438 = vmatpush1.xpose.msra.mxu0 %v429
        %439 = vmatprep.subr.mxu0 0.0
        %440 = vmatpush1.xpose.msra.mxu0 0.0
        %441 = vmatprep.subr.mxu0 0.0
        %442 = vmatpush1.xpose.msra.mxu0 0.0
        %443 = vmatprep.subr.mxu0 0.0
        %444 = vmatpush1.xpose.msra.mxu0 0.0
        %445 = vmatprep.subr.mxu0 0.0
        %446 = vmatpush1.xpose.msra.mxu0 0.0
        %447 = vmatprep.subr.mxu0 0.0
        %448 = vmatpush1.xpose.msra.mxu0 0.0
        %449 = vmatprep.subr.mxu0 0.0
        %450 = vmatpush1.xpose.msra.mxu0 0.0
        %451 = vmatprep.subr.mxu0 0.0
        %452 = vmatpush1.xpose.msra.mxu0 0.0
        %453 = vmatprep.subr.mxu0 0.0
        %454 = vmatpush1.xpose.msra.mxu0 0.0
        %455 = vmatprep.subr.mxu0 0.0
        %456 = vmatpush1.xpose.msra.mxu0 0.0
        %457 = vmatprep.subr.mxu0 0.0
        %458 = vmatpush1.xpose.msra.mxu0 0.0
        %459 = vmatprep.subr.mxu0 0.0
        %460 = vmatpush1.xpose.msra.mxu0 0.0
        %461 = vmatprep.subr.mxu0 0.0
        %462 = vmatpush1.xpose.msra.mxu0 0.0
        %463 = vmatprep.subr.mxu0 0.0
        %464 = vmatpush1.xpose.msra.mxu0 0.0
        %465 = vmatprep.subr.mxu0 0.0
        %466 = vmatpush1.xpose.msra.mxu0 0.0
        %467 = vmatprep.subr.mxu0 0.0
        %468 = vmatpush1.xpose.msra.mxu0 0.0
        %469 = vmatprep.subr.mxu0 0.0
        %470 = vmatpush1.xpose.msra.mxu0 0.0
        %471 = vmatprep.subr.mxu0 0.0
        %472 = vmatpush1.xpose.msra.mxu0 0.0
        %473 = vmatprep.subr.mxu0 0.0
        %474 = vmatpush1.xpose.msra.mxu0 0.0
        %475 = vmatprep.subr.mxu0 0.0
        %476 = vmatpush1.xpose.msra.mxu0 0.0
        %477 = vmatprep.subr.mxu0 0.0
        %478 = vmatpush1.xpose.msra.mxu0 0.0
        %479 = vmatprep.subr.mxu0 0.0
        %480 = vmatpush1.xpose.msra.mxu0 0.0
        %481 = vmatprep.subr.mxu0 0.0
        %482 = vmatpush1.xpose.msra.mxu0 0.0
        %483 = vmatprep.subr.mxu0 0.0
        %484 = vmatpush1.xpose.msra.mxu0 0.0
        %485 = vmatprep.subr.mxu0 0.0
        %486 = vmatpush1.xpose.msra.mxu0 0.0
        %487 = vmatprep.subr.mxu0 0.0
        %488 = vmatpush1.xpose.msra.mxu0 0.0
        %489 = vmatprep.subr.mxu0 0.0
        %490 = vmatpush1.xpose.msra.mxu0 0.0
        %491 = vmatprep.subr.mxu0 0.0
        %492 = vmatpush1.xpose.msra.mxu0 0.0
        %493 = vmatprep.subr.mxu0 0.0
        %494 = vmatpush1.xpose.msra.mxu0 0.0
        %495 = vmatprep.mubr.f32.mxu0 0.0
        %496 = vmatmul.mubr.f32.gmra.mrb[0].mxu0 %v417
        %v497 = vpop.f32.mrb[0].mxu0
        %v498 = vadd.f32 0.0, %v497
        %v499 = vpop.f32.mrb[0].mxu0
        %500 = vdwg.mxu0
        %v501 = vadd.f32 %v410, %v498
        %502 = vst.msk [vmem:[#allocation2] sm:$0xff] %vm307, %v501
        // Predicated region
        $region45: #{_feed_forward_impl.1} parent=39 // pred_check
          %p503 = pneg %p285
        $region46: #{_feed_forward_impl.1} parent=39 // pred_check_branch
          %505 = sbr.rel (%p503) target = $region48
        $region47: #{_feed_forward_impl.1} parent=39 // pred_region
          %v506 = vld [vmem:[#allocation2] sm:$0xff]
          %v507 = vld [vmem:[%s4] sm:$0x1]
          %v509 = vlaneseq
          %v510 = vshrl.u32 %v509, 7
          %v511 = vsub.s32 0, %v510
          %v512 = vrot.slane %v507, %v511
          %v514 = vadd.f32 %v506, %v512
          %515 = vst.msk [vmem:[%s267] sm:$0xff] %vm307, %v514
        $region48: #{_feed_forward_impl.1} parent=39 // pred_fallthru
          _
        %s516 = sand.u32 %s164, 1
        %s517 = scalar_lea.sflag [#allocation4], %s516
        %s518 = sand.u32 %s164, 1
        %s519 = smul.addr %s518, 8
        %s520 = scalar_lea.vmem [#allocation3], %s519
        // Predicated region
        $region49: #{_feed_forward_impl.1} parent=39 // pred_check
          %p521 = pneg %p174
        $region50: #{_feed_forward_impl.1} parent=39 // pred_check_branch
          %523 = sbr.rel (%p521) target = $region52
        $region51: #{_feed_forward_impl.1} parent=39 // pred_region
          %s525 = ssub.s32 128, 128
          %526 = vsyncadd %s517, %s525
          %s527 = smul.addr %s23, 128
          %s528 = scalar_lea.hbm %s5, %s527
          %s530 = sshll.u32 %s520, 4
          %s531 = int_to_ptr.vmem [resolvable:$true] %s530
          %533 = dma.vmem_to_hbm [thread:$0]  %s531, 128, %s528, %s517
        $region52: #{_feed_forward_impl.1} parent=39 // pred_fallthru
          _
      $region40: #{_feed_forward_impl.1} parent=5 // pred_fallthru
        _
      %p534 = scmp.le.s32.totalorder 2, %s14
      // Predicated region
      $region53: #{_feed_forward_impl.1} parent=5 // pred_check
        %p535 = pneg %p534
      $region54: #{_feed_forward_impl.1} parent=5 // pred_check_branch
        %537 = sbr.rel (%p535) target = $region56
      $region55: #{_feed_forward_impl.1} parent=5 // pred_region
        %s538 = ssub.s32 %s14, 2
        // Predicated region
        $region57: #{_feed_forward_impl.1} parent=55 // pred_check
          %p539 = pneg %p180
        $region58: #{_feed_forward_impl.1} parent=55 // pred_check_branch
          %541 = sbr.rel (%p539) target = $region60
        $region59: #{_feed_forward_impl.1} parent=55 // pred_region
          %s542 = sand.u32 %s165, 1
          %s543 = scalar_lea.sflag [#allocation4], %s542
          %s544 = sand.u32 %s165, 1
          %s545 = smul.addr %s544, 8
          %s546 = scalar_lea.vmem [#allocation3], %s545
          %547 = dma.done %s543, 128
        $region60: #{_feed_forward_impl.1} parent=55 // pred_fallthru
          _
      $region56: #{_feed_forward_impl.1} parent=5 // pred_fallthru
        _
    $region6: #{_feed_forward_impl.1} parent=1 // loop_footer
      %s18 = sadd.s32 1, %s14
    $region7: #{_feed_forward_impl.1} parent=1 // loop_footer_branch
      %13 = sbr.rel target = $region3
    $region8: #{_feed_forward_impl.1} parent=1 // loop_exit
      _
    %548 = vsyncpa [#allocation4], 1
    %s549 = scalar_lea.sflag [#allocation4], 1
    %550 = vsyncpa %s549, 1

</llo_original>
